<compile_context>
chip_gen: v5e
topology: v5e:2x2
jax: 0.10.0
libtpu: 0.0.40
codegen_flags: <defaults>
</compile_context>

<pallas_src>
import jax
import jax.numpy as jnp
from jax.experimental import pallas as pl
from jax.experimental.pallas import tpu as pltpu


def _sigmoid_mul_kernel(gate_ref, x_ref, o_ref):
    # gate_ref: (N*C, 1)  pre-sigmoid gate values (one per channel)
    # x_ref:    (N*C, HW) features
    # o_ref:    (N*C, HW) = x * sigmoid(gate), broadcast over HW
    g = jax.nn.sigmoid(gate_ref[...].astype(jnp.float32)).astype(x_ref.dtype)
    o_ref[...] = x_ref[...] * g


def sigmoid_mul(x184, x186):
    """x184: (N, C, H, W) features; x186: (N, C, 1, 1) gate.

    Returns x184 * sigmoid(x186) with the same shape/dtype as x184.
    """
    n, c, h, w = x184.shape
    assert x186.shape == (n, c, 1, 1)

    nc, hw = n * c, h * w
    x2d = x184.reshape(nc, hw)   # free reshape (contiguous), channels on sublanes
    g2d = x186.reshape(nc, 1)    # one gate value per (n, c) row

    out2d = pl.pallas_call(
        _sigmoid_mul_kernel,
        out_shape=jax.ShapeDtypeStruct((nc, hw), x184.dtype),
        # No grid: whole arrays live in VMEM, no pipeline scaffolding or
        # double-buffering for this tiny, overhead-bound op.
        in_specs=[
            pl.BlockSpec(memory_space=pltpu.MemorySpace.VMEM),
            pl.BlockSpec(memory_space=pltpu.MemorySpace.VMEM),
        ],
        out_specs=pl.BlockSpec(memory_space=pltpu.MemorySpace.VMEM),
    )(g2d, x2d)

    return out2d.reshape(n, c, h, w)


if __name__ == "__main__":
    key = jax.random.PRNGKey(0)
    k1, k2 = jax.random.split(key)

    # Shapes from the module: x184 = (1, 128, 14, 14), x186 = (1, 128, 1, 1)
    x184 = jax.random.normal(k1, (1, 128, 14, 14), dtype=jnp.float32)
    x186 = jax.random.normal(k2, (1, 128, 1, 1), dtype=jnp.float32)

    out = jax.block_until_ready(sigmoid_mul(x184, x186))
    ref = x184 * jax.nn.sigmoid(x186)
    assert out.shape == (1, 128, 14, 14)
    assert jnp.allclose(out, ref, atol=1e-6, rtol=1e-6)

    # Generality check: N > 1 folded into the sublane axis.
    k3, k4 = jax.random.split(k2)
    xb = jax.random.normal(k3, (2, 8, 7, 7), dtype=jnp.float32)
    gb = jax.random.normal(k4, (2, 8, 1, 1), dtype=jnp.float32)
    outb = jax.block_until_ready(sigmoid_mul(xb, gb))
    refb = xb * jax.nn.sigmoid(gb)
    assert jnp.allclose(outb, refb, atol=1e-6, rtol=1e-6)

    print("KERNEL_OK")
</pallas_src>

<mosaic_0001>
module attributes {stable_mosaic.version = 11 : i64} {
  func.func @_sigmoid_mul_kernel(%arg0: memref<128x1xf32, #tpu.memory_space<vmem>>, %arg1: memref<128x196xf32, #tpu.memory_space<vmem>>, %arg2: memref<128x196xf32, #tpu.memory_space<vmem>>) attributes {dimension_semantics = [], scalar_prefetch = 0 : i64, scratch_operands = 0 : i64, tpu.core_type = #tpu.core_type<tc>} {
    %c0 = arith.constant 0 : index
    %c0_0 = arith.constant 0 : index
    %0 = vector.load %arg0[%c0, %c0_0] : memref<128x1xf32, #tpu.memory_space<vmem>>, vector<128x1xf32>
    %1 = arith.negf %0 : vector<128x1xf32>
    %2 = math.exp %1 : vector<128x1xf32>
    %cst = arith.constant 1.000000e+00 : f32
    %3 = vector.broadcast %cst : f32 to vector<128x1xf32>
    %4 = arith.addf %3, %2 : vector<128x1xf32>
    %5 = arith.divf %3, %4 : vector<128x1xf32>
    %c0_1 = arith.constant 0 : index
    %c0_2 = arith.constant 0 : index
    %6 = vector.load %arg1[%c0_1, %c0_2] : memref<128x196xf32, #tpu.memory_space<vmem>>, vector<128x196xf32>
    %7 = vector.broadcast %5 : vector<128x1xf32> to vector<128x196xf32>
    %8 = arith.mulf %6, %7 : vector<128x196xf32>
    %c0_3 = arith.constant 0 : index
    %c0_4 = arith.constant 0 : index
    %9 = vector.load %arg2[%c0_3, %c0_4] : memref<128x196xf32, #tpu.memory_space<vmem>>, vector<128x196xf32>
    tpu.vector_store %arg2[%c0_3, %c0_4], %8 {strides = array<i32>} : memref<128x196xf32, #tpu.memory_space<vmem>>, vector<128x196xf32>,
    return
  }
}

</mosaic_0001>

<llo_original>
// kernel: tpu_custom_call.1
$region0: #{tpu_custom_call.1}
  #allocation0 [shape = 'u32[]', space=smem, size = 0x4, offset = 0x4, fixed_abs, tag = 'smem constant byte address 0x4 - core index']
  #allocation1 [shape = 'u32[72,128]{1,0:T(1,128)}', space=vmem, size = 0x9000, scoped, tag = 'internal scratch']
  %s0 = inlined_call_operand.vmem [shape: f32[128,1], index: 0, kind: input, shape index: {}]
  %s1 = inlined_call_operand.vmem [shape: f32[128,196], index: 1, kind: input, shape index: {}]
  %s2 = inlined_call_operand.vmem [shape: f32[128,196], index: 2, kind: output, shape index: {}]
  %s3 = sld [smem:[#allocation0]]
  $region18: #{tpu_custom_call.1} parent=0
    _
  %s5 = ssub.s32 1, %s3
  %s6 = scalar_select 0, %s5, %s3
  // Predicated region
  $region2: #{tpu_custom_call.1} parent=0 // pred_check
    _
  $region3: #{tpu_custom_call.1} parent=0 // pred_check_branch
    %8 = sbr.rel (0) target = $region5
  $region4: #{tpu_custom_call.1} parent=0 // pred_region
    _
  $region5: #{tpu_custom_call.1} parent=0 // pred_fallthru
    _
  // Predicated region
  $region6: #{tpu_custom_call.1} parent=0 // pred_check
    _
  $region7: #{tpu_custom_call.1} parent=0 // pred_check_branch
    %10 = sbr.rel (0) target = $region9
  $region8: #{tpu_custom_call.1} parent=0 // pred_region
    _
  $region9: #{tpu_custom_call.1} parent=0 // pred_fallthru
    _
  %v11 = vld [vmem:[%s0] sm:$0xff]
  %v12 = vld [vmem:[%s0 + $0x8] sm:$0xff]
  %v13 = vld [vmem:[%s0 + $0x10] sm:$0xff]
  %v14 = vld [vmem:[%s0 + $0x18] sm:$0xff]
  %v15 = vld [vmem:[%s0 + $0x20] sm:$0xff]
  %v16 = vld [vmem:[%s0 + $0x28] sm:$0xff]
  %v17 = vld [vmem:[%s0 + $0x30] sm:$0xff]
  %v18 = vld [vmem:[%s0 + $0x38] sm:$0xff]
  %v19 = vld [vmem:[%s0 + $0x40] sm:$0xff]
  %v20 = vld [vmem:[%s0 + $0x48] sm:$0xff]
  %v21 = vld [vmem:[%s0 + $0x50] sm:$0xff]
  %v22 = vld [vmem:[%s0 + $0x58] sm:$0xff]
  %v23 = vld [vmem:[%s0 + $0x60] sm:$0xff]
  %v24 = vld [vmem:[%s0 + $0x68] sm:$0xff]
  %v25 = vld [vmem:[%s0 + $0x70] sm:$0xff]
  %v26 = vld [vmem:[%s0 + $0x78] sm:$0xff]
  %v27 = vxor.u32 %v11, 2147483648
  %v28 = vxor.u32 %v12, 2147483648
  %v29 = vxor.u32 %v13, 2147483648
  %v30 = vxor.u32 %v14, 2147483648
  %v31 = vxor.u32 %v15, 2147483648
  %v32 = vxor.u32 %v16, 2147483648
  %v33 = vxor.u32 %v17, 2147483648
  %v34 = vxor.u32 %v18, 2147483648
  %v35 = vxor.u32 %v19, 2147483648
  %v36 = vxor.u32 %v20, 2147483648
  %v37 = vxor.u32 %v21, 2147483648
  %v38 = vxor.u32 %v22, 2147483648
  %v39 = vxor.u32 %v23, 2147483648
  %v40 = vxor.u32 %v24, 2147483648
  %v41 = vxor.u32 %v25, 2147483648
  %v42 = vxor.u32 %v26, 2147483648
  %v43 = vmul.f32 %v27, 1.442695
  %v44 = vpow.pop %v43
  %v45 = vmul.f32 %v28, 1.442695
  %v46 = vpow.pop %v45
  %v47 = vmul.f32 %v29, 1.442695
  %v48 = vpow.pop %v47
  %v49 = vmul.f32 %v30, 1.442695
  %v50 = vpow.pop %v49
  %v51 = vmul.f32 %v31, 1.442695
  %v52 = vpow.pop %v51
  %v53 = vmul.f32 %v32, 1.442695
  %v54 = vpow.pop %v53
  %v55 = vmul.f32 %v33, 1.442695
  %v56 = vpow.pop %v55
  %v57 = vmul.f32 %v34, 1.442695
  %v58 = vpow.pop %v57
  %v59 = vmul.f32 %v35, 1.442695
  %v60 = vpow.pop %v59
  %v61 = vmul.f32 %v36, 1.442695
  %v62 = vpow.pop %v61
  %v63 = vmul.f32 %v37, 1.442695
  %v64 = vpow.pop %v63
  %v65 = vmul.f32 %v38, 1.442695
  %v66 = vpow.pop %v65
  %v67 = vmul.f32 %v39, 1.442695
  %v68 = vpow.pop %v67
  %v69 = vmul.f32 %v40, 1.442695
  %v70 = vpow.pop %v69
  %v71 = vmul.f32 %v41, 1.442695
  %v72 = vpow.pop %v71
  %v73 = vmul.f32 %v42, 1.442695
  %v74 = vpow.pop %v73
  %v75 = vadd.f32 %v44, 1.0
  %v76 = vadd.f32 %v46, 1.0
  %v77 = vadd.f32 %v48, 1.0
  %v78 = vadd.f32 %v50, 1.0
  %v79 = vadd.f32 %v52, 1.0
  %v80 = vadd.f32 %v54, 1.0
  %v81 = vadd.f32 %v56, 1.0
  %v82 = vadd.f32 %v58, 1.0
  %v83 = vadd.f32 %v60, 1.0
  %v84 = vadd.f32 %v62, 1.0
  %v85 = vadd.f32 %v64, 1.0
  %v86 = vadd.f32 %v66, 1.0
  %v87 = vadd.f32 %v68, 1.0
  %v88 = vadd.f32 %v70, 1.0
  %v89 = vadd.f32 %v72, 1.0
  %v90 = vadd.f32 %v74, 1.0
  %v91 = vrcp.pop %v75
  %v92 = vmul.f32 %v75, %v91
  %v93 = vsub.f32 1.0, %v92
  %v94 = vmul.f32 %v91, %v93
  %v95 = vadd.f32 %v91, %v94
  %vm96 = vweird.f32 %v75
  %vm97 = vweird.f32 %v91
  %vm98 = vmor %vm96, %vm97
  %v99 = vsel %vm98, %v91, %v95
  %v100 = vand.u32 2147483647, %v75
  %vm101 = vcmp.eq.f32.partialorder %v100, 8.507059e+37
  %v102 = vand.u32 %v75, 2147483648
  %v103 = vor.u32 1.1754944e-38, %v102
  %v104 = vsel %vm101, %v103, %v99
  %v105 = vmul.f32 1.0, %v104
  %v106 = vrcp.pop %v76
  %v107 = vmul.f32 %v76, %v106
  %v108 = vsub.f32 1.0, %v107
  %v109 = vmul.f32 %v106, %v108
  %v110 = vadd.f32 %v106, %v109
  %vm111 = vweird.f32 %v76
  %vm112 = vweird.f32 %v106
  %vm113 = vmor %vm111, %vm112
  %v114 = vsel %vm113, %v106, %v110
  %v115 = vand.u32 2147483647, %v76
  %vm116 = vcmp.eq.f32.partialorder %v115, 8.507059e+37
  %v117 = vand.u32 %v76, 2147483648
  %v118 = vor.u32 1.1754944e-38, %v117
  %v119 = vsel %vm116, %v118, %v114
  %v120 = vmul.f32 1.0, %v119
  %v121 = vrcp.pop %v77
  %v122 = vmul.f32 %v77, %v121
  %v123 = vsub.f32 1.0, %v122
  %v124 = vmul.f32 %v121, %v123
  %v125 = vadd.f32 %v121, %v124
  %vm126 = vweird.f32 %v77
  %vm127 = vweird.f32 %v121
  %vm128 = vmor %vm126, %vm127
  %v129 = vsel %vm128, %v121, %v125
  %v130 = vand.u32 2147483647, %v77
  %vm131 = vcmp.eq.f32.partialorder %v130, 8.507059e+37
  %v132 = vand.u32 %v77, 2147483648
  %v133 = vor.u32 1.1754944e-38, %v132
  %v134 = vsel %vm131, %v133, %v129
  %v135 = vmul.f32 1.0, %v134
  %v136 = vrcp.pop %v78
  %v137 = vmul.f32 %v78, %v136
  %v138 = vsub.f32 1.0, %v137
  %v139 = vmul.f32 %v136, %v138
  %v140 = vadd.f32 %v136, %v139
  %vm141 = vweird.f32 %v78
  %vm142 = vweird.f32 %v136
  %vm143 = vmor %vm141, %vm142
  %v144 = vsel %vm143, %v136, %v140
  %v145 = vand.u32 2147483647, %v78
  %vm146 = vcmp.eq.f32.partialorder %v145, 8.507059e+37
  %v147 = vand.u32 %v78, 2147483648
  %v148 = vor.u32 1.1754944e-38, %v147
  %v149 = vsel %vm146, %v148, %v144
  %v150 = vmul.f32 1.0, %v149
  %v151 = vrcp.pop %v79
  %v152 = vmul.f32 %v79, %v151
  %v153 = vsub.f32 1.0, %v152
  %v154 = vmul.f32 %v151, %v153
  %v155 = vadd.f32 %v151, %v154
  %vm156 = vweird.f32 %v79
  %vm157 = vweird.f32 %v151
  %vm158 = vmor %vm156, %vm157
  %v159 = vsel %vm158, %v151, %v155
  %v160 = vand.u32 2147483647, %v79
  %vm161 = vcmp.eq.f32.partialorder %v160, 8.507059e+37
  %v162 = vand.u32 %v79, 2147483648
  %v163 = vor.u32 1.1754944e-38, %v162
  %v164 = vsel %vm161, %v163, %v159
  %v165 = vmul.f32 1.0, %v164
  %v166 = vrcp.pop %v80
  %v167 = vmul.f32 %v80, %v166
  %v168 = vsub.f32 1.0, %v167
  %v169 = vmul.f32 %v166, %v168
  %v170 = vadd.f32 %v166, %v169
  %vm171 = vweird.f32 %v80
  %vm172 = vweird.f32 %v166
  %vm173 = vmor %vm171, %vm172
  %v174 = vsel %vm173, %v166, %v170
  %v175 = vand.u32 2147483647, %v80
  %vm176 = vcmp.eq.f32.partialorder %v175, 8.507059e+37
  %v177 = vand.u32 %v80, 2147483648
  %v178 = vor.u32 1.1754944e-38, %v177
  %v179 = vsel %vm176, %v178, %v174
  %v180 = vmul.f32 1.0, %v179
  %v181 = vrcp.pop %v81
  %v182 = vmul.f32 %v81, %v181
  %v183 = vsub.f32 1.0, %v182
  %v184 = vmul.f32 %v181, %v183
  %v185 = vadd.f32 %v181, %v184
  %vm186 = vweird.f32 %v81
  %vm187 = vweird.f32 %v181
  %vm188 = vmor %vm186, %vm187
  %v189 = vsel %vm188, %v181, %v185
  %v190 = vand.u32 2147483647, %v81
  %vm191 = vcmp.eq.f32.partialorder %v190, 8.507059e+37
  %v192 = vand.u32 %v81, 2147483648
  %v193 = vor.u32 1.1754944e-38, %v192
  %v194 = vsel %vm191, %v193, %v189
  %v195 = vmul.f32 1.0, %v194
  %v196 = vrcp.pop %v82
  %v197 = vmul.f32 %v82, %v196
  %v198 = vsub.f32 1.0, %v197
  %v199 = vmul.f32 %v196, %v198
  %v200 = vadd.f32 %v196, %v199
  %vm201 = vweird.f32 %v82
  %vm202 = vweird.f32 %v196
  %vm203 = vmor %vm201, %vm202
  %v204 = vsel %vm203, %v196, %v200
  %v205 = vand.u32 2147483647, %v82
  %vm206 = vcmp.eq.f32.partialorder %v205, 8.507059e+37
  %v207 = vand.u32 %v82, 2147483648
  %v208 = vor.u32 1.1754944e-38, %v207
  %v209 = vsel %vm206, %v208, %v204
  %v210 = vmul.f32 1.0, %v209
  %v211 = vrcp.pop %v83
  %v212 = vmul.f32 %v83, %v211
  %v213 = vsub.f32 1.0, %v212
  %v214 = vmul.f32 %v211, %v213
  %v215 = vadd.f32 %v211, %v214
  %vm216 = vweird.f32 %v83
  %vm217 = vweird.f32 %v211
  %vm218 = vmor %vm216, %vm217
  %v219 = vsel %vm218, %v211, %v215
  %v220 = vand.u32 2147483647, %v83
  %vm221 = vcmp.eq.f32.partialorder %v220, 8.507059e+37
  %v222 = vand.u32 %v83, 2147483648
  %v223 = vor.u32 1.1754944e-38, %v222
  %v224 = vsel %vm221, %v223, %v219
  %v225 = vmul.f32 1.0, %v224
  %v226 = vrcp.pop %v84
  %v227 = vmul.f32 %v84, %v226
  %v228 = vsub.f32 1.0, %v227
  %v229 = vmul.f32 %v226, %v228
  %v230 = vadd.f32 %v226, %v229
  %vm231 = vweird.f32 %v84
  %vm232 = vweird.f32 %v226
  %vm233 = vmor %vm231, %vm232
  %v234 = vsel %vm233, %v226, %v230
  %v235 = vand.u32 2147483647, %v84
  %vm236 = vcmp.eq.f32.partialorder %v235, 8.507059e+37
  %v237 = vand.u32 %v84, 2147483648
  %v238 = vor.u32 1.1754944e-38, %v237
  %v239 = vsel %vm236, %v238, %v234
  %v240 = vmul.f32 1.0, %v239
  %v241 = vrcp.pop %v85
  %v242 = vmul.f32 %v85, %v241
  %v243 = vsub.f32 1.0, %v242
  %v244 = vmul.f32 %v241, %v243
  %v245 = vadd.f32 %v241, %v244
  %vm246 = vweird.f32 %v85
  %vm247 = vweird.f32 %v241
  %vm248 = vmor %vm246, %vm247
  %v249 = vsel %vm248, %v241, %v245
  %v250 = vand.u32 2147483647, %v85
  %vm251 = vcmp.eq.f32.partialorder %v250, 8.507059e+37
  %v252 = vand.u32 %v85, 2147483648
  %v253 = vor.u32 1.1754944e-38, %v252
  %v254 = vsel %vm251, %v253, %v249
  %v255 = vmul.f32 1.0, %v254
  %v256 = vrcp.pop %v86
  %v257 = vmul.f32 %v86, %v256
  %v258 = vsub.f32 1.0, %v257
  %v259 = vmul.f32 %v256, %v258
  %v260 = vadd.f32 %v256, %v259
  %vm261 = vweird.f32 %v86
  %vm262 = vweird.f32 %v256
  %vm263 = vmor %vm261, %vm262
  %v264 = vsel %vm263, %v256, %v260
  %v265 = vand.u32 2147483647, %v86
  %vm266 = vcmp.eq.f32.partialorder %v265, 8.507059e+37
  %v267 = vand.u32 %v86, 2147483648
  %v268 = vor.u32 1.1754944e-38, %v267
  %v269 = vsel %vm266, %v268, %v264
  %v270 = vmul.f32 1.0, %v269
  %v271 = vrcp.pop %v87
  %v272 = vmul.f32 %v87, %v271
  %v273 = vsub.f32 1.0, %v272
  %v274 = vmul.f32 %v271, %v273
  %v275 = vadd.f32 %v271, %v274
  %vm276 = vweird.f32 %v87
  %vm277 = vweird.f32 %v271
  %vm278 = vmor %vm276, %vm277
  %v279 = vsel %vm278, %v271, %v275
  %v280 = vand.u32 2147483647, %v87
  %vm281 = vcmp.eq.f32.partialorder %v280, 8.507059e+37
  %v282 = vand.u32 %v87, 2147483648
  %v283 = vor.u32 1.1754944e-38, %v282
  %v284 = vsel %vm281, %v283, %v279
  %v285 = vmul.f32 1.0, %v284
  %v286 = vrcp.pop %v88
  %v287 = vmul.f32 %v88, %v286
  %v288 = vsub.f32 1.0, %v287
  %v289 = vmul.f32 %v286, %v288
  %v290 = vadd.f32 %v286, %v289
  %vm291 = vweird.f32 %v88
  %vm292 = vweird.f32 %v286
  %vm293 = vmor %vm291, %vm292
  %v294 = vsel %vm293, %v286, %v290
  %v295 = vand.u32 2147483647, %v88
  %vm296 = vcmp.eq.f32.partialorder %v295, 8.507059e+37
  %v297 = vand.u32 %v88, 2147483648
  %v298 = vor.u32 1.1754944e-38, %v297
  %v299 = vsel %vm296, %v298, %v294
  %v300 = vmul.f32 1.0, %v299
  %v301 = vrcp.pop %v89
  %v302 = vmul.f32 %v89, %v301
  %v303 = vsub.f32 1.0, %v302
  %v304 = vmul.f32 %v301, %v303
  %v305 = vadd.f32 %v301, %v304
  %vm306 = vweird.f32 %v89
  %vm307 = vweird.f32 %v301
  %vm308 = vmor %vm306, %vm307
  %v309 = vsel %vm308, %v301, %v305
  %v310 = vand.u32 2147483647, %v89
  %vm311 = vcmp.eq.f32.partialorder %v310, 8.507059e+37
  %v312 = vand.u32 %v89, 2147483648
  %v313 = vor.u32 1.1754944e-38, %v312
  %v314 = vsel %vm311, %v313, %v309
  %v315 = vmul.f32 1.0, %v314
  %v316 = vrcp.pop %v90
  %v317 = vmul.f32 %v90, %v316
  %v318 = vsub.f32 1.0, %v317
  %v319 = vmul.f32 %v316, %v318
  %v320 = vadd.f32 %v316, %v319
  %vm321 = vweird.f32 %v90
  %vm322 = vweird.f32 %v316
  %vm323 = vmor %vm321, %vm322
  %v324 = vsel %vm323, %v316, %v320
  %v325 = vand.u32 2147483647, %v90
  %vm326 = vcmp.eq.f32.partialorder %v325, 8.507059e+37
  %v327 = vand.u32 %v90, 2147483648
  %v328 = vor.u32 1.1754944e-38, %v327
  %v329 = vsel %vm326, %v328, %v324
  %v330 = vmul.f32 1.0, %v329
  %v331 = vld [vmem:[%s1] sm:$0xff]
  %v332 = vld [vmem:[%s1 + $0x8] sm:$0xff]
  %v333 = vld [vmem:[%s1 + $0x10] sm:$0xff]
  %v334 = vld [vmem:[%s1 + $0x18] sm:$0xff]
  %v335 = vld [vmem:[%s1 + $0x20] sm:$0xff]
  %v336 = vld [vmem:[%s1 + $0x28] sm:$0xff]
  %v337 = vld [vmem:[%s1 + $0x30] sm:$0xff]
  %v338 = vld [vmem:[%s1 + $0x38] sm:$0xff]
  %v339 = vld [vmem:[%s1 + $0x40] sm:$0xff]
  %v340 = vld [vmem:[%s1 + $0x48] sm:$0xff]
  %v341 = vld [vmem:[%s1 + $0x50] sm:$0xff]
  %v342 = vld [vmem:[%s1 + $0x58] sm:$0xff]
  %v343 = vld [vmem:[%s1 + $0x60] sm:$0xff]
  %v344 = vld [vmem:[%s1 + $0x68] sm:$0xff]
  %v345 = vld [vmem:[%s1 + $0x70] sm:$0xff]
  %v346 = vld [vmem:[%s1 + $0x78] sm:$0xff]
  %v347 = vld [vmem:[%s1 + $0x80] sm:$0xff]
  %v348 = vld [vmem:[%s1 + $0x88] sm:$0xff]
  %v349 = vld [vmem:[%s1 + $0x90] sm:$0xff]
  %v350 = vld [vmem:[%s1 + $0x98] sm:$0xff]
  %v351 = vld [vmem:[%s1 + $0xa0] sm:$0xff]
  %v352 = vld [vmem:[%s1 + $0xa8] sm:$0xff]
  %v353 = vld [vmem:[%s1 + $0xb0] sm:$0xff]
  %v354 = vld [vmem:[%s1 + $0xb8] sm:$0xff]
  %v355 = vld [vmem:[%s1 + $0xc0] sm:$0xff]
  %v356 = vld [vmem:[%s1 + $0xc8] sm:$0xff]
  %v357 = vld [vmem:[%s1 + $0xd0] sm:$0xff]
  %v358 = vld [vmem:[%s1 + $0xd8] sm:$0xff]
  %v359 = vld [vmem:[%s1 + $0xe0] sm:$0xff]
  %v360 = vld [vmem:[%s1 + $0xe8] sm:$0xff]
  %v361 = vld [vmem:[%s1 + $0xf0] sm:$0xff]
  %v362 = vld [vmem:[%s1 + $0xf8] sm:$0xff]
  %364 = vset.pattern.permute.xlu0 0
  %365 = vperm.xlu0 %364, %v105
  %v366 = vpop.permute.xlu0 %365
  %369 = vset.pattern.permute.xlu0 0
  %370 = vperm.xlu0 %369, %v120
  %v371 = vpop.permute.xlu0 %370
  %374 = vset.pattern.permute.xlu0 0
  %375 = vperm.xlu0 %374, %v135
  %v376 = vpop.permute.xlu0 %375
  %379 = vset.pattern.permute.xlu0 0
  %380 = vperm.xlu0 %379, %v150
  %v381 = vpop.permute.xlu0 %380
  %384 = vset.pattern.permute.xlu0 0
  %385 = vperm.xlu0 %384, %v165
  %v386 = vpop.permute.xlu0 %385
  %389 = vset.pattern.permute.xlu0 0
  %390 = vperm.xlu0 %389, %v180
  %v391 = vpop.permute.xlu0 %390
  %394 = vset.pattern.permute.xlu0 0
  %395 = vperm.xlu0 %394, %v195
  %v396 = vpop.permute.xlu0 %395
  %399 = vset.pattern.permute.xlu0 0
  %400 = vperm.xlu0 %399, %v210
  %v401 = vpop.permute.xlu0 %400
  %404 = vset.pattern.permute.xlu0 0
  %405 = vperm.xlu0 %404, %v225
  %v406 = vpop.permute.xlu0 %405
  %409 = vset.pattern.permute.xlu0 0
  %410 = vperm.xlu0 %409, %v240
  %v411 = vpop.permute.xlu0 %410
  %414 = vset.pattern.permute.xlu0 0
  %415 = vperm.xlu0 %414, %v255
  %v416 = vpop.permute.xlu0 %415
  %419 = vset.pattern.permute.xlu0 0
  %420 = vperm.xlu0 %419, %v270
  %v421 = vpop.permute.xlu0 %420
  %424 = vset.pattern.permute.xlu0 0
  %425 = vperm.xlu0 %424, %v285
  %v426 = vpop.permute.xlu0 %425
  %429 = vset.pattern.permute.xlu0 0
  %430 = vperm.xlu0 %429, %v300
  %v431 = vpop.permute.xlu0 %430
  %434 = vset.pattern.permute.xlu0 0
  %435 = vperm.xlu0 %434, %v315
  %v436 = vpop.permute.xlu0 %435
  %439 = vset.pattern.permute.xlu0 0
  %440 = vperm.xlu0 %439, %v330
  %v441 = vpop.permute.xlu0 %440
  %v443 = vmul.f32 %v331, %v366
  %v444 = vmul.f32 %v332, %v366
  %v445 = vmul.f32 %v333, %v371
  %v446 = vmul.f32 %v334, %v371
  %v447 = vmul.f32 %v335, %v376
  %v448 = vmul.f32 %v336, %v376
  %v449 = vmul.f32 %v337, %v381
  %v450 = vmul.f32 %v338, %v381
  %v451 = vmul.f32 %v339, %v386
  %v452 = vmul.f32 %v340, %v386
  %v453 = vmul.f32 %v341, %v391
  %v454 = vmul.f32 %v342, %v391
  %v455 = vmul.f32 %v343, %v396
  %v456 = vmul.f32 %v344, %v396
  %v457 = vmul.f32 %v345, %v401
  %v458 = vmul.f32 %v346, %v401
  %v459 = vmul.f32 %v347, %v406
  %v460 = vmul.f32 %v348, %v406
  %v461 = vmul.f32 %v349, %v411
  %v462 = vmul.f32 %v350, %v411
  %v463 = vmul.f32 %v351, %v416
  %v464 = vmul.f32 %v352, %v416
  %v465 = vmul.f32 %v353, %v421
  %v466 = vmul.f32 %v354, %v421
  %v467 = vmul.f32 %v355, %v426
  %v468 = vmul.f32 %v356, %v426
  %v469 = vmul.f32 %v357, %v431
  %v470 = vmul.f32 %v358, %v431
  %v471 = vmul.f32 %v359, %v436
  %v472 = vmul.f32 %v360, %v436
  %v473 = vmul.f32 %v361, %v441
  %v474 = vmul.f32 %v362, %v441
  %475 = vst [vmem:[%s2] sm:$0xff] %v443
  %vm476 = vcmask 556032
  %477 = vst.msk [vmem:[%s2 + $0x8] sm:$0xff] %vm476, %v444
  %478 = vst [vmem:[%s2 + $0x10] sm:$0xff] %v445
  %479 = vst.msk [vmem:[%s2 + $0x18] sm:$0xff] %vm476, %v446
  %480 = vst [vmem:[%s2 + $0x20] sm:$0xff] %v447
  %481 = vst.msk [vmem:[%s2 + $0x28] sm:$0xff] %vm476, %v448
  %482 = vst [vmem:[%s2 + $0x30] sm:$0xff] %v449
  %483 = vst.msk [vmem:[%s2 + $0x38] sm:$0xff] %vm476, %v450
  %484 = vst [vmem:[%s2 + $0x40] sm:$0xff] %v451
  %485 = vst.msk [vmem:[%s2 + $0x48] sm:$0xff] %vm476, %v452
  %486 = vst [vmem:[%s2 + $0x50] sm:$0xff] %v453
  %487 = vst.msk [vmem:[%s2 + $0x58] sm:$0xff] %vm476, %v454
  %488 = vst [vmem:[%s2 + $0x60] sm:$0xff] %v455
  %489 = vst.msk [vmem:[%s2 + $0x68] sm:$0xff] %vm476, %v456
  %490 = vst [vmem:[%s2 + $0x70] sm:$0xff] %v457
  %491 = vst.msk [vmem:[%s2 + $0x78] sm:$0xff] %vm476, %v458
  %492 = vst [vmem:[%s2 + $0x80] sm:$0xff] %v459
  %493 = vst.msk [vmem:[%s2 + $0x88] sm:$0xff] %vm476, %v460
  %494 = vst [vmem:[%s2 + $0x90] sm:$0xff] %v461
  %495 = vst.msk [vmem:[%s2 + $0x98] sm:$0xff] %vm476, %v462
  %496 = vst [vmem:[%s2 + $0xa0] sm:$0xff] %v463
  %497 = vst.msk [vmem:[%s2 + $0xa8] sm:$0xff] %vm476, %v464
  %498 = vst [vmem:[%s2 + $0xb0] sm:$0xff] %v465
  %499 = vst.msk [vmem:[%s2 + $0xb8] sm:$0xff] %vm476, %v466
  %500 = vst [vmem:[%s2 + $0xc0] sm:$0xff] %v467
  %501 = vst.msk [vmem:[%s2 + $0xc8] sm:$0xff] %vm476, %v468
  %502 = vst [vmem:[%s2 + $0xd0] sm:$0xff] %v469
  %503 = vst.msk [vmem:[%s2 + $0xd8] sm:$0xff] %vm476, %v470
  %504 = vst [vmem:[%s2 + $0xe0] sm:$0xff] %v471
  %505 = vst.msk [vmem:[%s2 + $0xe8] sm:$0xff] %vm476, %v472
  %506 = vst [vmem:[%s2 + $0xf0] sm:$0xff] %v473
  %507 = vst.msk [vmem:[%s2 + $0xf8] sm:$0xff] %vm476, %v474
  // Predicated region
  $region10: #{tpu_custom_call.1} parent=0 // pred_check
    _
  $region11: #{tpu_custom_call.1} parent=0 // pred_check_branch
    %509 = sbr.rel (0) target = $region13
  $region12: #{tpu_custom_call.1} parent=0 // pred_region
    _
  $region13: #{tpu_custom_call.1} parent=0 // pred_fallthru
    _
  // Predicated region
  $region14: #{tpu_custom_call.1} parent=0 // pred_check
    _
  $region15: #{tpu_custom_call.1} parent=0 // pred_check_branch
    %511 = sbr.rel (0) target = $region17
  $region16: #{tpu_custom_call.1} parent=0 // pred_region
    _
  $region17: #{tpu_custom_call.1} parent=0 // pred_fallthru
    _

</llo_original>
